<compile_context>
chip_gen: v7x
topology: tpu7x:2x2x1
jax: 0.10.0
libtpu: 0.0.40
codegen_flags: <defaults>
</compile_context>

<pallas_src>
import jax
import jax.numpy as jnp
from jax.experimental import pallas as pl
from jax.experimental.pallas import tpu as pltpu


def gru_seq_kernel(tok_ref,    # SMEM scalar prefetch: (T,) int32 token ids (consumed by index_maps)
                   emb_ref,    # (1, 1, H) bf16  embedding row for the current step
                   h0_ref,     # (1, H)   f32    initial hidden state (VMEM-resident)
                   wcat_ref,   # (H, 6H)  bf16   [W_ih^T | W_hh^T]  (VMEM-resident)
                   bias_ref,   # (2, 3H)  f32    row0 = b_ih, row1 = b_hh (VMEM-resident)
                   out_ref,    # (1, 1, H) f32   hidden state after this step
                   h_scr):     # VMEM (1, H) f32 hidden carried across grid steps
    del tok_ref  # only used by the index_maps
    H = h0_ref.shape[-1]
    t = pl.program_id(0)

    @pl.when(t == 0)
    def _():
        h_scr[...] = h0_ref[...]

    h = h_scr[...]                                                     # (1, H) f32

    # Fused gate matmul: one MXU push instead of two M=1 pushes.
    # lhs row 0 = x (bf16 embedding row, no round-trip cast), row 1 = h (bf16).
    lhs = jnp.concatenate([emb_ref[0], h.astype(jnp.bfloat16)], axis=0)  # (2, H) bf16
    prod = jnp.dot(lhs, wcat_ref[...],
                   preferred_element_type=jnp.float32)                 # (2, 6H) f32
    gi = prod[0:1, 0:3 * H] + bias_ref[0:1, :]                         # x @ W_ih^T + b_ih
    gh = prod[1:2, 3 * H:6 * H] + bias_ref[1:2, :]                     # h @ W_hh^T + b_hh

    # PyTorch GRU semantics, gate order (r, z, n); elementwise math stays f32.
    r = jax.nn.sigmoid(gi[:, 0:H] + gh[:, 0:H])
    z = jax.nn.sigmoid(gi[:, H:2 * H] + gh[:, H:2 * H])
    n = jnp.tanh(gi[:, 2 * H:3 * H] + r * gh[:, 2 * H:3 * H])
    h_new = (1.0 - z) * n + z * h

    h_scr[...] = h_new
    out_ref[0] = h_new.astype(out_ref.dtype)


def _prep_params(params):
    emb = params["embedding"]
    V, H = emb.shape
    emb3 = emb.astype(jnp.bfloat16).reshape(V, 1, H)                   # row-gatherable layout
    wcat = jnp.concatenate(
        [params["weight_ih"].T, params["weight_hh"].T], axis=1
    ).astype(jnp.bfloat16)                                             # (H, 6H)
    bias = jnp.stack(
        [params["bias_ih"], params["bias_hh"]], axis=0
    ).astype(jnp.float32)                                              # (2, 3H)
    return emb3, wcat, bias


def trans_encoder_sequence(tokens, hidden, params):
    """Run the GRU encoder over a token sequence with weights VMEM-resident.

    tokens: (T,) int32.  hidden: (1, 1, H).
    Returns (outputs (T, 1, H), final hidden (1, 1, H))."""
    emb3, wcat, bias = _prep_params(params)
    V, _, H = emb3.shape
    tokens = jnp.asarray(tokens, jnp.int32).reshape(-1)
    T = int(tokens.shape[0])
    h0 = hidden.reshape(1, H).astype(jnp.float32)

    outs = pl.pallas_call(
        gru_seq_kernel,
        out_shape=jax.ShapeDtypeStruct((T, 1, H), jnp.float32),
        grid_spec=pltpu.PrefetchScalarGridSpec(
            num_scalar_prefetch=1,
            grid=(T,),
            in_specs=[
                # One embedding row per step; row chosen by the prefetched token id.
                pl.BlockSpec((1, 1, H), lambda t, tok: (tok[t], 0, 0)),
                pl.BlockSpec((1, H), lambda t, tok: (0, 0)),           # h0: resident
                pl.BlockSpec((H, 6 * H), lambda t, tok: (0, 0)),       # fused weights: resident
                pl.BlockSpec((2, 3 * H), lambda t, tok: (0, 0)),       # merged biases: resident
            ],
            out_specs=pl.BlockSpec((1, 1, H), lambda t, tok: (t, 0, 0)),
            scratch_shapes=[pltpu.VMEM((1, H), jnp.float32)],
        ),
        compiler_params=pltpu.CompilerParams(
            # Hidden state carries across steps via scratch -> time axis is sequential.
            dimension_semantics=("arbitrary",)),
    )(tokens, emb3, h0, wcat, bias)

    hidden_out = outs[T - 1:T].reshape(1, 1, H)
    return outs, hidden_out


def trans_encoder_forward(token, hidden, params):
    """Single-step forward matching the PyTorch module: returns (output, hidden), each (1, 1, H)."""
    tokens = jnp.asarray(token, jnp.int32).reshape(1)
    outs, hid = trans_encoder_sequence(tokens, hidden, params)
    H = hid.shape[-1]
    return outs.reshape(1, 1, H), hid


def init_params(key, input_size, hidden_size):
    """Deterministic synthetic parameters; init ranges mimic PyTorch defaults."""
    H = hidden_size
    k_emb, k1, k2, k3, k4 = jax.random.split(key, 5)
    bound = 1.0 / jnp.sqrt(jnp.float32(H))
    u = lambda k, shape: jax.random.uniform(k, shape, jnp.float32, -bound, bound)
    return {
        "embedding": jax.random.normal(k_emb, (input_size, H), jnp.float32),
        "weight_ih": u(k1, (3 * H, H)),
        "weight_hh": u(k2, (3 * H, H)),
        "bias_ih":   u(k3, (3 * H,)),
        "bias_hh":   u(k4, (3 * H,)),
    }


def _reference_sequence(tokens, hidden, params):
    """Pure-JAX reference of the PyTorch forward, using the same bf16 weight cast."""
    H = params["embedding"].shape[1]
    emb_bf = params["embedding"].astype(jnp.bfloat16)
    wih_bf = params["weight_ih"].T.astype(jnp.bfloat16)   # (H, 3H)
    whh_bf = params["weight_hh"].T.astype(jnp.bfloat16)   # (H, 3H)
    b_ih = params["bias_ih"].reshape(1, 3 * H)
    b_hh = params["bias_hh"].reshape(1, 3 * H)

    h = hidden.reshape(1, H).astype(jnp.float32)
    outs = []
    for i in range(int(tokens.shape[0])):
        x = emb_bf[tokens[i]].reshape(1, H)
        gi = jnp.dot(x, wih_bf, preferred_element_type=jnp.float32) + b_ih
        gh = jnp.dot(h.astype(jnp.bfloat16), whh_bf,
                     preferred_element_type=jnp.float32) + b_hh
        r = jax.nn.sigmoid(gi[:, 0:H] + gh[:, 0:H])
        z = jax.nn.sigmoid(gi[:, H:2 * H] + gh[:, H:2 * H])
        n = jnp.tanh(gi[:, 2 * H:3 * H] + r * gh[:, 2 * H:3 * H])
        h = (1.0 - z) * n + z * h
        outs.append(h)
    outs = jnp.stack(outs, axis=0).reshape(-1, 1, H)
    return outs, h.reshape(1, 1, H)


if __name__ == "__main__":
    input_size = 16    # vocabulary size
    hidden_size = 32
    seq_len = 8

    key = jax.random.PRNGKey(0)
    params = init_params(key, input_size, hidden_size)
    hidden0 = jnp.zeros((1, 1, hidden_size), jnp.float32)

    # --- Single step: matches the PyTorch module's forward(input, hidden) ---
    token = jnp.int32(3)
    out1, hid1 = trans_encoder_forward(token, hidden0, params)
    out1 = jax.block_until_ready(out1)
    hid1 = jax.block_until_ready(hid1)
    ref_out1, ref_hid1 = _reference_sequence(jnp.asarray([3], jnp.int32), hidden0, params)
    assert out1.shape == (1, 1, hidden_size) and hid1.shape == (1, 1, hidden_size)
    assert jnp.allclose(out1, ref_out1.reshape(1, 1, hidden_size), atol=2e-3), \
        "single-step output mismatch vs reference"
    assert jnp.allclose(hid1, ref_hid1, atol=2e-3), "single-step hidden mismatch vs reference"

    # --- Multi-step: weights stay VMEM-resident across the whole sequence ---
    tokens = jax.random.randint(jax.random.PRNGKey(1), (seq_len,), 0, input_size, jnp.int32)
    outs, hid = trans_encoder_sequence(tokens, hidden0, params)
    outs = jax.block_until_ready(outs)
    hid = jax.block_until_ready(hid)
    ref_outs, ref_hid = _reference_sequence(tokens, hidden0, params)
    assert outs.shape == (seq_len, 1, hidden_size) and hid.shape == (1, 1, hidden_size)
    assert jnp.allclose(outs, ref_outs, atol=2e-3), "sequence outputs mismatch vs reference"
    assert jnp.allclose(hid, ref_hid, atol=2e-3), "sequence hidden mismatch vs reference"

    print("KERNEL_OK")
</pallas_src>

<mosaic_0001>
module attributes {stable_mosaic.version = 11 : i64} {
  func.func @gru_seq_kernel(%arg0: i32, %arg1: memref<1xi32, #tpu.memory_space<smem>>, %arg2: memref<1x1x32xbf16, #tpu.memory_space<vmem>>, %arg3: memref<1x32xf32, #tpu.memory_space<vmem>>, %arg4: memref<32x192xbf16, #tpu.memory_space<vmem>>, %arg5: memref<2x96xf32, #tpu.memory_space<vmem>>, %arg6: memref<1x1x32xf32, #tpu.memory_space<vmem>>, %arg7: memref<1x32xf32, #tpu.memory_space<vmem>>) attributes {dimension_semantics = [#tpu.dimension_semantics<arbitrary>], iteration_bounds = array<i64: 1>, scalar_prefetch = 1 : i64, scratch_operands = 1 : i64, tpu.core_type = #tpu.core_type<tc>, window_params = [{transform_indices = @transform_0, window_bounds = array<i64: 1, 1, 32>}, {pipeline_mode = #tpu.pipeline_mode<synchronous>, transform_indices = @transform_1, window_bounds = array<i64: 1, 32>}, {pipeline_mode = #tpu.pipeline_mode<synchronous>, transform_indices = @transform_2, window_bounds = array<i64: 32, 192>}, {pipeline_mode = #tpu.pipeline_mode<synchronous>, transform_indices = @transform_3, window_bounds = array<i64: 2, 96>}, {transform_indices = @transform_4, window_bounds = array<i64: 1, 1, 32>}]} {
    %c0_i32 = arith.constant 0 : i32
    %0 = arith.cmpi eq, %arg0, %c0_i32 : i32
    %1 = arith.extui %0 : i1 to i32
    %c0_i32_0 = arith.constant 0 : i32
    %2 = arith.cmpi ne, %1, %c0_i32_0 : i32
    scf.if %2 {
      %c0_18 = arith.constant 0 : index
      %c0_19 = arith.constant 0 : index
      %46 = vector.load %arg3[%c0_18, %c0_19] : memref<1x32xf32, #tpu.memory_space<vmem>>, vector<1x32xf32>
      %c0_20 = arith.constant 0 : index
      %c0_21 = arith.constant 0 : index
      %47 = vector.load %arg7[%c0_20, %c0_21] : memref<1x32xf32, #tpu.memory_space<vmem>>, vector<1x32xf32>
      tpu.vector_store %arg7[%c0_20, %c0_21], %46 {strides = array<i32>} : memref<1x32xf32, #tpu.memory_space<vmem>>, vector<1x32xf32>,
    } else {
    }
    %c0 = arith.constant 0 : index
    %c0_1 = arith.constant 0 : index
    %3 = vector.load %arg7[%c0, %c0_1] : memref<1x32xf32, #tpu.memory_space<vmem>>, vector<1x32xf32>
    %c0_2 = arith.constant 0 : index
    %c0_3 = arith.constant 0 : index
    %c0_4 = arith.constant 0 : index
    %4 = vector.load %arg2[%c0_2, %c0_3, %c0_4] : memref<1x1x32xbf16, #tpu.memory_space<vmem>>, vector<1x1x32xbf16>
    %5 = vector.shape_cast %4 : vector<1x1x32xbf16> to vector<1x32xbf16>
    %6 = arith.truncf %3 : vector<1x32xf32> to vector<1x32xbf16>
    %7 = tpu.concatenate %5, %6 in 0 : vector<1x32xbf16>, vector<1x32xbf16> -> vector<2x32xbf16>
    %c0_5 = arith.constant 0 : index
    %c0_6 = arith.constant 0 : index
    %8 = vector.load %arg4[%c0_5, %c0_6] : memref<32x192xbf16, #tpu.memory_space<vmem>>, vector<32x192xbf16>
    %cst = arith.constant dense<0.000000e+00> : vector<2x192xf32>
    %9 = tpu.matmul %7, %8, %cst {dimension_numbers = #tpu.dot_dimension_numbers<[1], [0], [0], [1], [0, 0, 1, 1], [], []>} : vector<2x32xbf16>, vector<32x192xbf16>, vector<2x192xf32> -> vector<2x192xf32>
    %10 = vector.extract_strided_slice %9 {offsets = [0, 0], sizes = [1, 96], strides = [1, 1]} : vector<2x192xf32> to vector<1x96xf32>
    %c0_7 = arith.constant 0 : index
    %c0_8 = arith.constant 0 : index
    %11 = vector.load %arg5[%c0_7, %c0_8] : memref<2x96xf32, #tpu.memory_space<vmem>>, vector<1x96xf32>
    %12 = arith.addf %10, %11 : vector<1x96xf32>
    %13 = vector.extract_strided_slice %9 {offsets = [1, 96], sizes = [1, 96], strides = [1, 1]} : vector<2x192xf32> to vector<1x96xf32>
    %c1 = arith.constant 1 : index
    %c0_9 = arith.constant 0 : index
    %14 = vector.load %arg5[%c1, %c0_9] : memref<2x96xf32, #tpu.memory_space<vmem>>, vector<1x96xf32>
    %15 = arith.addf %13, %14 : vector<1x96xf32>
    %16 = vector.extract_strided_slice %12 {offsets = [0, 0], sizes = [1, 32], strides = [1, 1]} : vector<1x96xf32> to vector<1x32xf32>
    %17 = vector.extract_strided_slice %15 {offsets = [0, 0], sizes = [1, 32], strides = [1, 1]} : vector<1x96xf32> to vector<1x32xf32>
    %18 = arith.addf %16, %17 : vector<1x32xf32>
    %19 = arith.negf %18 : vector<1x32xf32>
    %20 = math.exp %19 : vector<1x32xf32>
    %cst_10 = arith.constant 1.000000e+00 : f32
    %21 = vector.broadcast %cst_10 : f32 to vector<1x32xf32>
    %22 = arith.addf %21, %20 : vector<1x32xf32>
    %23 = arith.divf %21, %22 : vector<1x32xf32>
    %24 = vector.extract_strided_slice %12 {offsets = [0, 32], sizes = [1, 32], strides = [1, 1]} : vector<1x96xf32> to vector<1x32xf32>
    %25 = vector.extract_strided_slice %15 {offsets = [0, 32], sizes = [1, 32], strides = [1, 1]} : vector<1x96xf32> to vector<1x32xf32>
    %26 = arith.addf %24, %25 : vector<1x32xf32>
    %27 = arith.negf %26 : vector<1x32xf32>
    %28 = math.exp %27 : vector<1x32xf32>
    %cst_11 = arith.constant 1.000000e+00 : f32
    %29 = vector.broadcast %cst_11 : f32 to vector<1x32xf32>
    %30 = arith.addf %29, %28 : vector<1x32xf32>
    %31 = arith.divf %29, %30 : vector<1x32xf32>
    %32 = vector.extract_strided_slice %12 {offsets = [0, 64], sizes = [1, 32], strides = [1, 1]} : vector<1x96xf32> to vector<1x32xf32>
    %33 = vector.extract_strided_slice %15 {offsets = [0, 64], sizes = [1, 32], strides = [1, 1]} : vector<1x96xf32> to vector<1x32xf32>
    %34 = arith.mulf %23, %33 : vector<1x32xf32>
    %35 = arith.addf %32, %34 : vector<1x32xf32>
    %36 = math.tanh %35 : vector<1x32xf32>
    %cst_12 = arith.constant 1.000000e+00 : f32
    %37 = vector.broadcast %cst_12 : f32 to vector<1x32xf32>
    %38 = arith.subf %37, %31 : vector<1x32xf32>
    %39 = arith.mulf %38, %36 : vector<1x32xf32>
    %40 = arith.mulf %31, %3 : vector<1x32xf32>
    %41 = arith.addf %39, %40 : vector<1x32xf32>
    %c0_13 = arith.constant 0 : index
    %c0_14 = arith.constant 0 : index
    %42 = vector.load %arg7[%c0_13, %c0_14] : memref<1x32xf32, #tpu.memory_space<vmem>>, vector<1x32xf32>
    tpu.vector_store %arg7[%c0_13, %c0_14], %41 {strides = array<i32>} : memref<1x32xf32, #tpu.memory_space<vmem>>, vector<1x32xf32>,
    %c0_15 = arith.constant 0 : index
    %c0_16 = arith.constant 0 : index
    %c0_17 = arith.constant 0 : index
    %43 = vector.load %arg6[%c0_15, %c0_16, %c0_17] : memref<1x1x32xf32, #tpu.memory_space<vmem>>, vector<1x1x32xf32>
    %44 = vector.shape_cast %43 : vector<1x1x32xf32> to vector<1x32xf32>
    %45 = vector.shape_cast %41 : vector<1x32xf32> to vector<1x1x32xf32>
    tpu.vector_store %arg6[%c0_15, %c0_16, %c0_17], %45 {strides = array<i32>} : memref<1x1x32xf32, #tpu.memory_space<vmem>>, vector<1x1x32xf32>,
    return
  }
  func.func @transform_0(%arg0: i32, %arg1: memref<1xi32, #tpu.memory_space<smem>>) -> (i32, i32, i32) {
    %0 = arith.index_cast %arg0 : i32 to index
    %1 = memref.load %arg1[%0] : memref<1xi32, #tpu.memory_space<smem>>
    %c0_i32 = arith.constant 0 : i32
    %c0_i32_0 = arith.constant 0 : i32
    %c0_i32_1 = arith.constant 0 : i32
    return %1, %c0_i32, %c0_i32_0 : i32, i32, i32
  }
  func.func @transform_1(%arg0: i32, %arg1: memref<1xi32, #tpu.memory_space<smem>>) -> (i32, i32) {
    %c0_i32 = arith.constant 0 : i32
    %c0_i32_0 = arith.constant 0 : i32
    %c0_i32_1 = arith.constant 0 : i32
    return %c0_i32, %c0_i32_0 : i32, i32
  }
  func.func @transform_2(%arg0: i32, %arg1: memref<1xi32, #tpu.memory_space<smem>>) -> (i32, i32) {
    %c0_i32 = arith.constant 0 : i32
    %c0_i32_0 = arith.constant 0 : i32
    %c0_i32_1 = arith.constant 0 : i32
    return %c0_i32, %c0_i32_0 : i32, i32
  }
  func.func @transform_3(%arg0: i32, %arg1: memref<1xi32, #tpu.memory_space<smem>>) -> (i32, i32) {
    %c0_i32 = arith.constant 0 : i32
    %c0_i32_0 = arith.constant 0 : i32
    %c0_i32_1 = arith.constant 0 : i32
    return %c0_i32, %c0_i32_0 : i32, i32
  }
  func.func @transform_4(%arg0: i32, %arg1: memref<1xi32, #tpu.memory_space<smem>>) -> (i32, i32, i32) {
    %c0_i32 = arith.constant 0 : i32
    %c0_i32_0 = arith.constant 0 : i32
    %c0_i32_1 = arith.constant 0 : i32
    return %arg0, %c0_i32, %c0_i32_0 : i32, i32, i32
  }
}

</mosaic_0001>

<llo_original>
// kernel: tpu_custom_call.1
$region0: #{tpu_custom_call.1}
  #allocation0 [shape = 'u32[]', space=smem, size = 0x4, offset = 0x4, fixed_abs, tag = 'smem constant byte address 0x4 - core index']
  #allocation1 [shape = 'u32[144,128]{1,0:T(1,128)}', space=vmem, size = 0x12000, scoped, tag = 'internal scratch']
  #allocation2 [shape = 'f32[1,32]{1,0:T(1,128)}', space=vmem, size = 0x200, scoped, tag = 'scratch operand']
  #allocation3 [shape = 's32[1]{0}', space=sflag, size = 0x4, scoped, tag = 'scoped memory for tpu_custom_call.1']
  #allocation4 [shape = 's32[1]{0:T(128)S(6)}', space=smem, size = 0x200, scoped, tag = 'prefetched SMEM operand 0']
  %s0 = inlined_call_operand.<no memory space> [shape: s32[1], index: 0, kind: input, shape index: {}]
  %s1 = inlined_call_operand.vmem [shape: bf16[16,1,32], index: 1, kind: input, shape index: {}]
  %s2 = inlined_call_operand.vmem [shape: f32[1,32], index: 2, kind: input, shape index: {}]
  %s3 = inlined_call_operand.vmem [shape: bf16[32,192], index: 3, kind: input, shape index: {}]
  %s4 = inlined_call_operand.vmem [shape: f32[2,96], index: 4, kind: input, shape index: {}]
  %s5 = inlined_call_operand.hbm [shape: f32[1,1,32], index: 5, kind: output, shape index: {}]
  %s6 = sld [smem:[#allocation0]]
  $region30: #{tpu_custom_call.1} parent=0
    _
  %s8 = ssub.s32 1, %s6
  %s9 = scalar_select 0, %s8, %s6
  %10 = sst [smem:[#allocation4]] %s0
  $region1: #{tpu_custom_call.1} parent=0
    #allocation5 [shape = 'u8[512]{0}', space=vmem, size = 0x400, scoped, tag = 'output window, operand 0, single buffered']
    #allocation6 [shape = 's32[1]{0}', space=sflag, size = 0x4, scoped, tag = 'scoped memory for tpu_custom_call.1']
    %11 = vsyncpa [#allocation6], 0
    // Predicated region
    $region2: #{tpu_custom_call.1} parent=1 // pred_check
      _
    $region3: #{tpu_custom_call.1} parent=1 // pred_check_branch
      %13 = sbr.rel (0) target = $region5
    $region4: #{tpu_custom_call.1} parent=1 // pred_region
      %s14 = sld [smem:[#allocation4]]
      %p15 = scmp.lt.s32.totalorder %s14, 15
      %s16 = scalar_select %p15, %s14, 15
      %s17 = scalar_lea.vmem %s1, %s16
      %s18 = sld [smem:[#allocation4]]
    $region5: #{tpu_custom_call.1} parent=1 // pred_fallthru
      _
    // Predicated region
    $region6: #{tpu_custom_call.1} parent=1 // pred_check
      _
    $region7: #{tpu_custom_call.1} parent=1 // pred_check_branch
      %20 = sbr.rel (0) target = $region9
    $region8: #{tpu_custom_call.1} parent=1 // pred_region
      _
    $region9: #{tpu_custom_call.1} parent=1 // pred_fallthru
      _
    // Predicated region
    $region10: #{tpu_custom_call.1} parent=1 // pred_check
      _
    $region11: #{tpu_custom_call.1} parent=1 // pred_check_branch
      %22 = sbr.rel (0) target = $region13
    $region12: #{tpu_custom_call.1} parent=1 // pred_region
      _
    $region13: #{tpu_custom_call.1} parent=1 // pred_fallthru
      _
    // Predicated region
    $region14: #{tpu_custom_call.1} parent=1 // pred_check
      _
    $region15: #{tpu_custom_call.1} parent=1 // pred_check_branch
      %24 = sbr.rel (0) target = $region17
    $region16: #{tpu_custom_call.1} parent=1 // pred_region
      _
    $region17: #{tpu_custom_call.1} parent=1 // pred_fallthru
      _
    %s25 = sld [smem:[#allocation4]]
    %p26 = scmp.lt.s32.totalorder %s25, 15
    %s27 = scalar_select %p26, %s25, 15
    %s28 = scalar_lea.vmem %s1, %s27
    %s29 = sld [smem:[#allocation4]]
    %p30 = scmp.lt.s32.totalorder %s29, 15
    %s31 = scalar_select %p30, %s29, 15
    %s32 = scalar_lea.vmem %s1, %s31
    %s33 = sld [smem:[#allocation4]]
    %p35 = scmp.eq.s32.totalorder 0, 0
    // Predicated region
    $region18: #{tpu_custom_call.1} parent=1 // pred_check
      %p36 = pneg %p35
    $region19: #{tpu_custom_call.1} parent=1 // pred_check_branch
      %38 = sbr.rel (%p36) target = $region21
    $region20: #{tpu_custom_call.1} parent=1 // pred_region
      %v39 = vld [vmem:[%s2] sm:$0x1]
      %vm40 = vcmask 253952
      %41 = vst.msk [vmem:[#allocation2] sm:$0x1] %vm40, %v39
    $region21: #{tpu_custom_call.1} parent=1 // pred_fallthru
      _
    %v42 = vld [vmem:[#allocation2] sm:$0x1]
    %v43 = vld [vmem:[%s32] sm:$0x1]
    %v44 = vpack.c.bf16 %v42, %v42
    %v46 = vshll.u32 %v44, 16
    %vm49 = vcmask 1040384
    %vm50 = vsmask.f32 256
    %vm51 = vmand %vm49, %vm50
    %v52 = vsel %vm51, %v43, %v46
    %v53 = vld [vmem:[%s3] sm:$0xff]
    %v54 = vld [vmem:[%s3 + $0x8] sm:$0xff]
    %v55 = vld [vmem:[%s3 + $0x10] sm:$0xff]
    %v56 = vld [vmem:[%s3 + $0x18] sm:$0xff]
    %v61 = vunpack.c.l.b16 %v53
    %v62 = vunpack.c.h.b16 %v53
    %v63 = vunpack.c.l.b16 %v54
    %v64 = vunpack.c.h.b16 %v54
    %v65 = vunpack.c.l.b16 %v55
    %v66 = vunpack.c.h.b16 %v55
    %v67 = vunpack.c.l.b16 %v56
    %v68 = vunpack.c.h.b16 %v56
    %v69 = vpack.c.b16 %v63, %v61
    %v70 = vpack.c.b16 %v64, %v62
    %v71 = vpack.c.b16 %v67, %v65
    %v72 = vpack.c.b16 %v68, %v66
    %vm77 = vcmask 261120
    %v79 = vsel %vm77, %v52, 0
    %81 = vmatprep.subr.bf16.mxu0 %v70
    %82 = vmatpush1.bf16.msra.mxu0 %v69
    %83 = vmatprep.subr.bf16.mxu0 %v72
    %84 = vmatpush1.bf16.msra.mxu0 %v71
    %85 = vmatprep.subr.bf16.mxu0 0
    %86 = vmatpush1.bf16.msra.mxu0 0
    %87 = vmatprep.subr.bf16.mxu0 0
    %88 = vmatpush1.bf16.msra.mxu0 0
    %89 = vmatprep.subr.bf16.mxu0 0
    %90 = vmatpush1.bf16.msra.mxu0 0
    %91 = vmatprep.subr.bf16.mxu0 0
    %92 = vmatpush1.bf16.msra.mxu0 0
    %93 = vmatprep.subr.bf16.mxu0 0
    %94 = vmatpush1.bf16.msra.mxu0 0
    %95 = vmatprep.subr.bf16.mxu0 0
    %96 = vmatpush1.bf16.msra.mxu0 0
    %97 = vmatprep.subr.bf16.mxu0 0
    %98 = vmatpush1.bf16.msra.mxu0 0
    %99 = vmatprep.subr.bf16.mxu0 0
    %100 = vmatpush1.bf16.msra.mxu0 0
    %101 = vmatprep.subr.bf16.mxu0 0
    %102 = vmatpush1.bf16.msra.mxu0 0
    %103 = vmatprep.subr.bf16.mxu0 0
    %104 = vmatpush1.bf16.msra.mxu0 0
    %105 = vmatprep.subr.bf16.mxu0 0
    %106 = vmatpush1.bf16.msra.mxu0 0
    %107 = vmatprep.subr.bf16.mxu0 0
    %108 = vmatpush1.bf16.msra.mxu0 0
    %109 = vmatprep.subr.bf16.mxu0 0
    %110 = vmatpush1.bf16.msra.mxu0 0
    %111 = vmatprep.subr.bf16.mxu0 0
    %112 = vmatpush1.bf16.msra.mxu0 0
    %113 = vmatprep.mubr.bf16.mxu0 0
    %114 = vmatmul.mubr.bf16.gmra.mrb[0].mxu0 %v79
    %v115 = vpop.f32.mrb[0].mxu0
    %v116 = vadd.f32 0.0, %v115
    %v117 = vpop.f32.mrb[0].mxu0
    %v118 = vadd.f32 0.0, %v117
    %v119 = vpop.f32.mrb[0].mxu0
    %v120 = vpop.f32.mrb[0].mxu0
    %121 = vdwg.mxu0
    %v122 = vld [vmem:[%s4] sm:$0x1]
    %v123 = vadd.f32 %v116, %v122
    %v124 = vld [vmem:[%s4 + $0x1] sm:$0x1]
    %v126 = vrot.slane %v124, 7
    %127 = vrot.lane.b32.xlu0 %v126, 96
    %v128 = vpop.permute.xlu0 %127
    %v130 = vadd.f32 %v116, %v128
    %v131 = vadd.f32 %v118, %v128
    %v133 = vrot.slane %v130, 1
    %134 = vrot.lane.b32.xlu0 %v133, 32
    %v135 = vpop.permute.xlu0 %134
    %v137 = vadd.f32 %v123, %v135
    %v138 = vxor.u32 %v137, 2147483648
    %v139 = vmul.f32 %v138, 1.442695
    %v140 = vpow.pop %v139
    %v141 = vadd.f32 %v140, 1.0
    %v142 = vrcp.pop %v141
    %v143 = vmul.f32 1.0, %v142
    %v145 = vrot.slane %v131, 1
    %146 = vrot.lane.b32.xlu0 %v145, 32
    %v147 = vpop.permute.xlu0 %146
    %v149 = vadd.f32 %v123, %v147
    %v150 = vxor.u32 %v149, 2147483648
    %v151 = vmul.f32 %v150, 1.442695
    %v152 = vpow.pop %v151
    %v153 = vadd.f32 %v152, 1.0
    %v154 = vrcp.pop %v153
    %v155 = vmul.f32 1.0, %v154
    %156 = vrot.lane.b32.xlu0 %v145, 96
    %v157 = vpop.permute.xlu0 %156
    %v159 = vmul.f32 %v143, %v157
    %161 = vrot.lane.b32.xlu0 %v159, 64
    %v162 = vpop.permute.xlu0 %161
    %v164 = vadd.f32 %v123, %v162
    %v165 = vtanh.pop %v164
    %v166 = vsub.f32 1.0, %v155
    %168 = vrot.lane.b32.xlu0 %v165, 96
    %v169 = vpop.permute.xlu0 %168
    %v171 = vmul.f32 %v166, %v169
    %v173 = vlaneseq
    %v174 = vshrl.u32 %v173, 7
    %v175 = vsub.s32 0, %v174
    %v176 = vrot.slane %v42, %v175
    %177 = vrot.lane.b32.xlu0 %v176, 32
    %v178 = vpop.permute.xlu0 %177
    %v180 = vmul.f32 %v155, %v178
    %v181 = vadd.f32 %v171, %v180
    %183 = vrot.lane.b32.xlu0 %v181, 96
    %v184 = vpop.permute.xlu0 %183
    %vm186 = vcmask 253952
    %187 = vst.msk [vmem:[#allocation2] sm:$0x1] %vm186, %v184
    %188 = vst.msk [vmem:[#allocation5] sm:$0x1] %vm186, %v184
    // Predicated region
    $region22: #{tpu_custom_call.1} parent=1 // pred_check
      _
    $region23: #{tpu_custom_call.1} parent=1 // pred_check_branch
      %190 = sbr.rel (0) target = $region25
    $region24: #{tpu_custom_call.1} parent=1 // pred_region
      %s192 = ssub.s32 16, 16
      %193 = vsyncadd [#allocation6], %s192
      %s195 = sshll.u32 [#allocation5], 4
      %s196 = int_to_ptr.vmem [resolvable:$true] %s195
      %198 = dma.vmem_to_hbm [thread:$0]  %s196, 16, %s5, [#allocation6]
    $region25: #{tpu_custom_call.1} parent=1 // pred_fallthru
      _
    // Predicated region
    $region26: #{tpu_custom_call.1} parent=1 // pred_check
      _
    $region27: #{tpu_custom_call.1} parent=1 // pred_check_branch
      %200 = sbr.rel (0) target = $region29
    $region28: #{tpu_custom_call.1} parent=1 // pred_region
      %201 = dma.done [#allocation6], 16
    $region29: #{tpu_custom_call.1} parent=1 // pred_fallthru
      _
    %202 = vsyncpa [#allocation6], 1

</llo_original>
